<compile_context>
chip_gen: v6e
topology: v6e:2x2x1
jax: 0.10.0
libtpu: 0.0.40
codegen_flags: <defaults>
</compile_context>

<pallas_src>
import numpy as np

import jax
import jax.numpy as jnp
from jax.experimental import pallas as pl
from jax.experimental.pallas import tpu as pltpu


# ----------------------------------------------------------------------------
# Module parameter construction (mirrors Downsample.__init__ buffer `filt`)
# ----------------------------------------------------------------------------
_BINOMIAL = {
    1: [1.0],
    2: [1.0, 1.0],
    3: [1.0, 2.0, 1.0],
    4: [1.0, 3.0, 3.0, 1.0],
    5: [1.0, 4.0, 6.0, 4.0, 1.0],
    6: [1.0, 5.0, 10.0, 10.0, 5.0, 1.0],
    7: [1.0, 6.0, 15.0, 20.0, 15.0, 6.0, 1.0],
}


def make_blur_filter(channels, filt_size=3, dtype=jnp.float32):
    """The module's `filt` buffer: (C, 1, k, k) depthwise blur kernel."""
    a = jnp.asarray(_BINOMIAL[filt_size], dtype)
    f2d = a[:, None] * a[None, :]
    f2d = f2d / jnp.sum(f2d)
    return jnp.broadcast_to(f2d[None, None], (channels, 1, filt_size, filt_size))


def _blur_matrix(n, filt_size, stride, pad_l, pad_r):
    """(n_out, n) matrix s.t. mat @ v == conv1d(reflect_pad(v,(pad_l,pad_r)),
    binomial(filt_size)/sum, stride).  Reflect-pad + blur + decimate, folded."""
    a = np.asarray(_BINOMIAL[filt_size], np.float64)
    f1 = a / a.sum()                         # 2D filt = outer(f1, f1)  (separable)
    n_pad = n + pad_l + pad_r
    n_out = (n_pad - filt_size) // stride + 1
    assert n_out >= 1 and pad_l <= n - 1 and pad_r <= n - 1, (n, filt_size)
    mat = np.zeros((n_out, n), np.float64)
    for o in range(n_out):
        for t in range(filt_size):
            i = o * stride + t - pad_l
            if i < 0:                        # ReflectionPad2d: index -1 -> 1
                i = -i
            if i >= n:                       # index n -> n-2
                i = 2 * (n - 1) - i
            mat[o, i] += f1[t]
    # Entries are small dyadic rationals -> exactly representable in bfloat16,
    # which keeps the bf16 MXU passes below exact.
    assert np.array_equal(np.asarray(mat, jnp.bfloat16).astype(np.float64), mat)
    return mat


# ----------------------------------------------------------------------------
# Pallas kernel: per-plane  out = A @ x @ M  (reflect-pad + blur + stride-2)
# ----------------------------------------------------------------------------
def _bf16_pieces(v, n_pieces):
    """Split v into bf16 pieces whose sum reconstructs v (exact for n=3, f32)."""
    if v.dtype == jnp.bfloat16 or n_pieces <= 1:
        return [v.astype(jnp.bfloat16)]
    pieces = []
    r = v.astype(jnp.float32)
    for _ in range(n_pieces - 1):
        p = r.astype(jnp.bfloat16)
        pieces.append(p)
        r = r - p.astype(jnp.float32)
    pieces.append(r.astype(jnp.bfloat16))
    return pieces


def _bmm_f32(lhs_pieces, rhs_pieces):
    """sum of batched matmuls: (P,I,K) x (P,K,J) -> (P,I,J), f32 accumulation."""
    dn = (((2,), (1,)), ((0,), (0,)))        # contract lhs dim2 / rhs dim1, batch 0
    acc = None
    for lp in lhs_pieces:
        for rp in rhs_pieces:
            part = jax.lax.dot_general(lp, rp, dimension_numbers=dn,
                                       preferred_element_type=jnp.float32)
            acc = part if acc is None else acc + part
    return acc


def _blurpool_kernel(x_ref, m_ref, a_ref, o_ref):
    pblk = x_ref.shape[0]
    x = x_ref[...]                                        # (Pblk, H, W)
    n_in = 3 if x.dtype == jnp.float32 else 1             # bf16x3 only for f32 data
    n_mid = 3 if o_ref.dtype == jnp.float32 else 2

    # Matrices are exact in bf16; broadcast once per invocation (hoisted, no loop).
    m_b = jnp.broadcast_to(m_ref[...][None], (pblk,) + m_ref.shape)   # (Pblk, W, Wo)
    a_b = jnp.broadcast_to(a_ref[...][None], (pblk,) + a_ref.shape)   # (Pblk, Ho, H)

    # Horizontal pass: reflect-pad + blur + stride-2 along W (lane axis), on MXU.
    t = _bmm_f32(_bf16_pieces(x, n_in), [m_b])            # (Pblk, H, Wo) f32
    # Vertical pass: same along H (sublane axis).
    out = _bmm_f32([a_b], _bf16_pieces(t, n_mid))         # (Pblk, Ho, Wo) f32
    o_ref[...] = out.astype(o_ref.dtype)


def downsample_forward(x_nchw, *, filt_size=3, stride=2, pad_off=0,
                       block_bytes_target=2 * 1024 * 1024, interpret=False):
    """Downsample.forward: reflect-pad -> depthwise binomial blur, stride 2.

    x_nchw: (B, C, H, W) float32 or bfloat16 (PyTorch layout in, layout out)."""
    if x_nchw.dtype not in (jnp.float32, jnp.bfloat16):
        x_nchw = x_nchw.astype(jnp.float32)
    B, C, H, W = x_nchw.shape

    pad_l = (filt_size - 1) // 2 + pad_off
    pad_r = -((filt_size - 1) // -2) + pad_off            # ceil((k-1)/2) + pad_off

    a_mat = _blur_matrix(H, filt_size, stride, pad_l, pad_r)       # (Ho, H)
    m_mat = _blur_matrix(W, filt_size, stride, pad_l, pad_r).T     # (W, Wo)
    Ho, Wo = a_mat.shape[0], m_mat.shape[1]
    a_bf = jnp.asarray(a_mat, jnp.bfloat16)
    m_bf = jnp.asarray(m_mat, jnp.bfloat16)

    # Planes = B*C: the blur is channel-uniform, so channels are a pure batch
    # axis and these reshapes are free leading-dim merges (no HBM pass).
    P = B * C
    x3 = x_nchw.reshape(P, H, W)

    # Block-size selection: ~block_bytes_target per step, >=4 grid steps when
    # possible (pipelining / v7x megacore), largest divisor of P (no masking).
    plane_bytes = H * W * x3.dtype.itemsize
    pblk = max(1, min(P, block_bytes_target // max(plane_bytes, 1)))
    if P >= 4:
        pblk = min(pblk, P // 4)
    while P % pblk:
        pblk -= 1
    grid = (P // pblk,)

    out = pl.pallas_call(
        _blurpool_kernel,
        out_shape=jax.ShapeDtypeStruct((P, Ho, Wo), x3.dtype),
        grid=grid,
        in_specs=[pl.BlockSpec((pblk, H, W), lambda p: (p, 0, 0)),
                  pl.BlockSpec((W, Wo), lambda p: (0, 0)),
                  pl.BlockSpec((Ho, H), lambda p: (0, 0))],
        out_specs=pl.BlockSpec((pblk, Ho, Wo), lambda p: (p, 0, 0)),
        compiler_params=pltpu.CompilerParams(
            dimension_semantics=("parallel",),
            vmem_limit_bytes=32 * 1024 * 1024),
        interpret=interpret,
    )(x3, m_bf, a_bf)

    return out.reshape(B, C, Ho, Wo)


# ----------------------------------------------------------------------------
# Pure-JAX reference (exact semantics of the PyTorch forward) for validation
# ----------------------------------------------------------------------------
def downsample_reference(x_nchw, filt, stride=2):
    k = filt.shape[-1]
    pad_l = (k - 1) // 2
    pad_r = -((k - 1) // -2)
    xp = jnp.pad(x_nchw, ((0, 0), (0, 0), (pad_l, pad_r), (pad_l, pad_r)),
                 mode="reflect")
    return jax.lax.conv_general_dilated(
        xp, filt, window_strides=(stride, stride), padding="VALID",
        dimension_numbers=("NCHW", "OIHW", "NCHW"),
        feature_group_count=x_nchw.shape[1])


if __name__ == "__main__":
    # Default module config: pad_type='reflect', filt_size=3, stride=2.
    B, C, H, W = 2, 4, 16, 16
    x = jax.random.normal(jax.random.PRNGKey(0), (B, C, H, W), jnp.float32)

    fwd = jax.jit(downsample_forward)
    y = fwd(x)
    jax.block_until_ready(y)

    y_ref = downsample_reference(x, make_blur_filter(C))
    assert y.shape == (B, C, (H - 1) // 2 + 1, (W - 1) // 2 + 1), y.shape
    assert bool(jnp.all(jnp.isfinite(y)))
    err = float(jnp.max(jnp.abs(y - y_ref)))
    assert err < 1e-5, err

    # Odd spatial sizes: exercises the reflect fold at the bottom/right edge.
    B2, C2, H2, W2 = 2, 3, 15, 13
    x2 = jax.random.normal(jax.random.PRNGKey(1), (B2, C2, H2, W2), jnp.float32)
    y2 = jax.jit(downsample_forward)(x2)
    jax.block_until_ready(y2)
    y2_ref = downsample_reference(x2, make_blur_filter(C2))
    assert y2.shape == y2_ref.shape, (y2.shape, y2_ref.shape)
    err2 = float(jnp.max(jnp.abs(y2 - y2_ref)))
    assert err2 < 1e-5, err2

    print("KERNEL_OK")
</pallas_src>

<mosaic_0001>
module attributes {stable_mosaic.version = 11 : i64} {
  func.func @_blurpool_kernel(%arg0: i32, %arg1: memref<2x16x16xf32, #tpu.memory_space<vmem>>, %arg2: memref<16x8xbf16, #tpu.memory_space<vmem>>, %arg3: memref<8x16xbf16, #tpu.memory_space<vmem>>, %arg4: memref<2x8x8xf32, #tpu.memory_space<vmem>>) attributes {dimension_semantics = [#tpu.dimension_semantics<parallel>], iteration_bounds = array<i64: 4>, scalar_prefetch = 0 : i64, scratch_operands = 0 : i64, tpu.core_type = #tpu.core_type<tc>, window_params = [{transform_indices = @transform_0, window_bounds = array<i64: 2, 16, 16>}, {pipeline_mode = #tpu.pipeline_mode<synchronous>, transform_indices = @transform_1, window_bounds = array<i64: 16, 8>}, {pipeline_mode = #tpu.pipeline_mode<synchronous>, transform_indices = @transform_2, window_bounds = array<i64: 8, 16>}, {transform_indices = @transform_3, window_bounds = array<i64: 2, 8, 8>}]} {
    %c0 = arith.constant 0 : index
    %c0_0 = arith.constant 0 : index
    %c0_1 = arith.constant 0 : index
    %0 = vector.load %arg1[%c0, %c0_0, %c0_1] : memref<2x16x16xf32, #tpu.memory_space<vmem>>, vector<2x16x16xf32>
    %c0_2 = arith.constant 0 : index
    %c0_3 = arith.constant 0 : index
    %1 = vector.load %arg2[%c0_2, %c0_3] : memref<16x8xbf16, #tpu.memory_space<vmem>>, vector<16x8xbf16>
    %2 = vector.shape_cast %1 : vector<16x8xbf16> to vector<1x16x8xbf16>
    %3 = vector.shape_cast %2 : vector<1x16x8xbf16> to vector<1x16x8xbf16>
    %4 = vector.broadcast %3 : vector<1x16x8xbf16> to vector<2x16x8xbf16>
    %c0_4 = arith.constant 0 : index
    %c0_5 = arith.constant 0 : index
    %5 = vector.load %arg3[%c0_4, %c0_5] : memref<8x16xbf16, #tpu.memory_space<vmem>>, vector<8x16xbf16>
    %6 = vector.shape_cast %5 : vector<8x16xbf16> to vector<1x8x16xbf16>
    %7 = vector.shape_cast %6 : vector<1x8x16xbf16> to vector<1x8x16xbf16>
    %8 = vector.broadcast %7 : vector<1x8x16xbf16> to vector<2x8x16xbf16>
    %9 = arith.truncf %0 : vector<2x16x16xf32> to vector<2x16x16xbf16>
    %10 = arith.extf %9 : vector<2x16x16xbf16> to vector<2x16x16xf32>
    %11 = arith.subf %0, %10 : vector<2x16x16xf32>
    %12 = arith.truncf %11 : vector<2x16x16xf32> to vector<2x16x16xbf16>
    %13 = arith.extf %12 : vector<2x16x16xbf16> to vector<2x16x16xf32>
    %14 = arith.subf %11, %13 : vector<2x16x16xf32>
    %15 = arith.truncf %14 : vector<2x16x16xf32> to vector<2x16x16xbf16>
    %cst = arith.constant dense<0.000000e+00> : vector<2x16x8xf32>
    %16 = tpu.matmul %9, %4, %cst {dimension_numbers = #tpu.dot_dimension_numbers<[2], [1], [1], [2], [0, 0, 0, 1, 1, 2], [0], [0]>} : vector<2x16x16xbf16>, vector<2x16x8xbf16>, vector<2x16x8xf32> -> vector<2x16x8xf32>
    %cst_6 = arith.constant dense<0.000000e+00> : vector<2x16x8xf32>
    %17 = tpu.matmul %12, %4, %cst_6 {dimension_numbers = #tpu.dot_dimension_numbers<[2], [1], [1], [2], [0, 0, 0, 1, 1, 2], [0], [0]>} : vector<2x16x16xbf16>, vector<2x16x8xbf16>, vector<2x16x8xf32> -> vector<2x16x8xf32>
    %18 = arith.addf %16, %17 : vector<2x16x8xf32>
    %cst_7 = arith.constant dense<0.000000e+00> : vector<2x16x8xf32>
    %19 = tpu.matmul %15, %4, %cst_7 {dimension_numbers = #tpu.dot_dimension_numbers<[2], [1], [1], [2], [0, 0, 0, 1, 1, 2], [0], [0]>} : vector<2x16x16xbf16>, vector<2x16x8xbf16>, vector<2x16x8xf32> -> vector<2x16x8xf32>
    %20 = arith.addf %18, %19 : vector<2x16x8xf32>
    %21 = arith.truncf %20 : vector<2x16x8xf32> to vector<2x16x8xbf16>
    %22 = arith.extf %21 : vector<2x16x8xbf16> to vector<2x16x8xf32>
    %23 = arith.subf %20, %22 : vector<2x16x8xf32>
    %24 = arith.truncf %23 : vector<2x16x8xf32> to vector<2x16x8xbf16>
    %25 = arith.extf %24 : vector<2x16x8xbf16> to vector<2x16x8xf32>
    %26 = arith.subf %23, %25 : vector<2x16x8xf32>
    %27 = arith.truncf %26 : vector<2x16x8xf32> to vector<2x16x8xbf16>
    %cst_8 = arith.constant dense<0.000000e+00> : vector<2x8x8xf32>
    %28 = tpu.matmul %8, %21, %cst_8 {dimension_numbers = #tpu.dot_dimension_numbers<[2], [1], [1], [2], [0, 0, 0, 1, 1, 2], [0], [0]>} : vector<2x8x16xbf16>, vector<2x16x8xbf16>, vector<2x8x8xf32> -> vector<2x8x8xf32>
    %cst_9 = arith.constant dense<0.000000e+00> : vector<2x8x8xf32>
    %29 = tpu.matmul %8, %24, %cst_9 {dimension_numbers = #tpu.dot_dimension_numbers<[2], [1], [1], [2], [0, 0, 0, 1, 1, 2], [0], [0]>} : vector<2x8x16xbf16>, vector<2x16x8xbf16>, vector<2x8x8xf32> -> vector<2x8x8xf32>
    %30 = arith.addf %28, %29 : vector<2x8x8xf32>
    %cst_10 = arith.constant dense<0.000000e+00> : vector<2x8x8xf32>
    %31 = tpu.matmul %8, %27, %cst_10 {dimension_numbers = #tpu.dot_dimension_numbers<[2], [1], [1], [2], [0, 0, 0, 1, 1, 2], [0], [0]>} : vector<2x8x16xbf16>, vector<2x16x8xbf16>, vector<2x8x8xf32> -> vector<2x8x8xf32>
    %32 = arith.addf %30, %31 : vector<2x8x8xf32>
    %c0_11 = arith.constant 0 : index
    %c0_12 = arith.constant 0 : index
    %c0_13 = arith.constant 0 : index
    %33 = vector.load %arg4[%c0_11, %c0_12, %c0_13] : memref<2x8x8xf32, #tpu.memory_space<vmem>>, vector<2x8x8xf32>
    tpu.vector_store %arg4[%c0_11, %c0_12, %c0_13], %32 {strides = array<i32>} : memref<2x8x8xf32, #tpu.memory_space<vmem>>, vector<2x8x8xf32>,
    return
  }
  func.func @transform_0(%arg0: i32) -> (i32, i32, i32) {
    %c0_i32 = arith.constant 0 : i32
    %c0_i32_0 = arith.constant 0 : i32
    %c0_i32_1 = arith.constant 0 : i32
    return %arg0, %c0_i32, %c0_i32_0 : i32, i32, i32
  }
  func.func @transform_1(%arg0: i32) -> (i32, i32) {
    %c0_i32 = arith.constant 0 : i32
    %c0_i32_0 = arith.constant 0 : i32
    %c0_i32_1 = arith.constant 0 : i32
    return %c0_i32, %c0_i32_0 : i32, i32
  }
  func.func @transform_2(%arg0: i32) -> (i32, i32) {
    %c0_i32 = arith.constant 0 : i32
    %c0_i32_0 = arith.constant 0 : i32
    %c0_i32_1 = arith.constant 0 : i32
    return %c0_i32, %c0_i32_0 : i32, i32
  }
  func.func @transform_3(%arg0: i32) -> (i32, i32, i32) {
    %c0_i32 = arith.constant 0 : i32
    %c0_i32_0 = arith.constant 0 : i32
    %c0_i32_1 = arith.constant 0 : i32
    return %arg0, %c0_i32, %c0_i32_0 : i32, i32, i32
  }
}

</mosaic_0001>

<llo_original>
// kernel: downsample_forward.1
$region0: #{downsample_forward.1}
  #allocation0 [shape = 'u32[]', space=smem, size = 0x4, offset = 0x4, fixed_abs, tag = 'smem constant byte address 0x4 - core index']
  #allocation1 [shape = 'u32[144,128]{1,0:T(1,128)}', space=vmem, size = 0x12000, scoped, tag = 'internal scratch']
  %s0 = inlined_call_operand.hbm [shape: f32[8,16,16], index: 0, kind: input, shape index: {}]
  %s1 = inlined_call_operand.hbm [shape: bf16[16,8], index: 1, kind: input, shape index: {}]
  %s2 = inlined_call_operand.hbm [shape: bf16[8,16], index: 2, kind: input, shape index: {}]
  %s3 = inlined_call_operand.hbm [shape: f32[8,8,8], index: 3, kind: output, shape index: {}]
  %s4 = sld [smem:[#allocation0]]
  $region57: #{downsample_forward.1} parent=0
    _
  %s6 = ssub.s32 1, %s4
  %s7 = scalar_select 0, %s6, %s4
  $region1: #{downsample_forward.1} parent=0
    #allocation2 [shape = 'u8[32768]{0}', space=vmem, size = 0x8000, scoped, tag = 'input window, operand 0']
    #allocation3 [shape = 's32[2]{0}', space=sflag, size = 0x8, scoped, tag = 'scoped memory for downsample_forward.1']
    #allocation4 [shape = 's32[2]{0}', space=sflag, size = 0x8, scoped, tag = 'scoped memory for downsample_forward.1']
    #allocation5 [shape = 'u8[4096]{0}', space=vmem, size = 0x1000, scoped, tag = 'input window, operand 1, single buffered']
    #allocation6 [shape = 's32[1]{0}', space=sflag, size = 0x4, scoped, tag = 'scoped memory for downsample_forward.1']
    #allocation7 [shape = 'u8[2048]{0}', space=vmem, size = 0x800, scoped, tag = 'input window, operand 2, single buffered']
    #allocation8 [shape = 'u8[16384]{0}', space=vmem, size = 0x4000, scoped, tag = 'output window, operand 0']
    %8 = vsyncpa [#allocation3], 0
    %s9 = scalar_lea.sflag [#allocation3], 1
    %10 = vsyncpa %s9, 0
    %11 = vsyncpa [#allocation6], 0
    %12 = vsyncpa [#allocation4], 0
    %s13 = scalar_lea.sflag [#allocation4], 1
    %14 = vsyncpa %s13, 0
    loop: start=0, step=1, limit=6
    $region2: #{downsample_forward.1} parent=1 // loop_pre_header
      _
    $region3: #{downsample_forward.1} parent=1 // loop_header
      %s16 = sphi 0, %s20
      %p17 = scmp.ge.s32.totalorder %s16, 6
      %s26 = sphi 0, %s28
      %s29 = sphi 0, %s26
      %s30 = sphi 0, %s29
      %s46 = sphi 0, %s30
      %s50 = sphi 0, %s50
      %s52 = sphi 0, %s50
      %s53 = sphi 0, %s52
      %s67 = sphi 0, %s53
      %s71 = sphi 0, %s71
      %s73 = sphi 0, %s71
      %s74 = sphi 0, %s73
      %s88 = sphi 0, %s74
      %s94 = sphi 0, %s96
      %s97 = sphi 0, %s94
      %s98 = sphi 0, %s97
      %s114 = sphi 0, %s98
    $region4: #{downsample_forward.1} parent=1 // loop_header_branch
      %19 = sbr.rel (%p17) target = $region8
    $region5: #{downsample_forward.1} parent=1 // loop_body
      %s21 = ssub.s32 %s16, 1
      %s22 = ssub.s32 %s16, 2
      %s23 = sadd.s32 %s16, 1
      %s24 = ssub.s32 %s16, %s23
      %p25 = scmp.eq.s32.totalorder %s24, 0
      %s27 = sadd.s32 %s26, 1
      %s28 = scalar_select %p25, %s26, %s27
      %p31 = pneg %p25
      %p32 = scmp.eq.s32.totalorder %s16, 3
      %p33 = por %p31, %p32
      %p34 = scmp.ne.s32.totalorder %s26, %s29
      %p35 = scmp.eq.s32.totalorder %s16, 0
      %p36 = por %p34, %p35
      %p37 = scmp.ne.s32.totalorder %s26, %s29
      %p38 = scmp.eq.s32.totalorder %s21, 3
      %p39 = por %p37, %p38
      %p40 = scmp.ne.s32.totalorder %s29, %s30
      %p41 = scmp.eq.s32.totalorder %s21, 0
      %p42 = por %p40, %p41
      %p43 = scmp.ne.s32.totalorder %s29, %s30
      %p44 = scmp.eq.s32.totalorder %s22, 3
      %p45 = por %p43, %p44
      %p47 = scmp.ne.s32.totalorder %s30, %s46
      %p48 = scmp.eq.s32.totalorder %s22, 0
      %p49 = por %p47, %p48
      %s51 = sadd.s32 %s50, 1
      %p54 = scmp.eq.s32.totalorder %s16, 3
      %p55 = scmp.ne.s32.totalorder %s50, %s52
      %p56 = scmp.eq.s32.totalorder %s16, 0
      %p57 = por %p55, %p56
      %p58 = scmp.ne.s32.totalorder %s50, %s52
      %p59 = scmp.eq.s32.totalorder %s21, 3
      %p60 = por %p58, %p59
      %p61 = scmp.ne.s32.totalorder %s52, %s53
      %p62 = scmp.eq.s32.totalorder %s21, 0
      %p63 = por %p61, %p62
      %p64 = scmp.ne.s32.totalorder %s52, %s53
      %p65 = scmp.eq.s32.totalorder %s22, 3
      %p66 = por %p64, %p65
      %p68 = scmp.ne.s32.totalorder %s53, %s67
      %p69 = scmp.eq.s32.totalorder %s22, 0
      %p70 = por %p68, %p69
      %s72 = sadd.s32 %s71, 1
      %p75 = scmp.eq.s32.totalorder %s16, 3
      %p76 = scmp.ne.s32.totalorder %s71, %s73
      %p77 = scmp.eq.s32.totalorder %s16, 0
      %p78 = por %p76, %p77
      %p79 = scmp.ne.s32.totalorder %s71, %s73
      %p80 = scmp.eq.s32.totalorder %s21, 3
      %p81 = por %p79, %p80
      %p82 = scmp.ne.s32.totalorder %s73, %s74
      %p83 = scmp.eq.s32.totalorder %s21, 0
      %p84 = por %p82, %p83
      %p85 = scmp.ne.s32.totalorder %s73, %s74
      %p86 = scmp.eq.s32.totalorder %s22, 3
      %p87 = por %p85, %p86
      %p89 = scmp.ne.s32.totalorder %s74, %s88
      %p90 = scmp.eq.s32.totalorder %s22, 0
      %p91 = por %p89, %p90
      %s92 = ssub.s32 %s16, %s23
      %p93 = scmp.eq.s32.totalorder %s92, 0
      %s95 = sadd.s32 %s94, 1
      %s96 = scalar_select %p93, %s94, %s95
      %p99 = pneg %p93
      %p100 = scmp.eq.s32.totalorder %s16, 3
      %p101 = por %p99, %p100
      %p102 = scmp.ne.s32.totalorder %s94, %s97
      %p103 = scmp.eq.s32.totalorder %s16, 0
      %p104 = por %p102, %p103
      %p105 = scmp.ne.s32.totalorder %s94, %s97
      %p106 = scmp.eq.s32.totalorder %s21, 3
      %p107 = por %p105, %p106
      %p108 = scmp.ne.s32.totalorder %s97, %s98
      %p109 = scmp.eq.s32.totalorder %s21, 0
      %p110 = por %p108, %p109
      %p111 = scmp.ne.s32.totalorder %s97, %s98
      %p112 = scmp.eq.s32.totalorder %s22, 3
      %p113 = por %p111, %p112
      %p115 = scmp.ne.s32.totalorder %s98, %s114
      %p116 = scmp.eq.s32.totalorder %s22, 0
      %p117 = por %p115, %p116
      %p118 = scmp.le.s32.totalorder 1, %s16
      %p119 = scmp.lt.s32.totalorder %s16, 5
      %p120 = pnand %p118, %p119
      %p121 = pneg %p120
      // Predicated region
      $region9: #{downsample_forward.1} parent=5 // pred_check
        _
      $region10: #{downsample_forward.1} parent=5 // pred_check_branch
        %123 = sbr.rel (%p120) target = $region12
      $region11: #{downsample_forward.1} parent=5 // pred_region
        %s124 = ssub.s32 %s16, 1
        // Predicated region
        $region13: #{downsample_forward.1} parent=11 // pred_check
          %p125 = pneg %p63
        $region14: #{downsample_forward.1} parent=11 // pred_check_branch
          %127 = sbr.rel (%p125) target = $region16
        $region15: #{downsample_forward.1} parent=11 // pred_region
          %s129 = ssub.s32 128, 128
          %130 = vsyncadd [#allocation6], %s129
          %s131 = sshll.u32 [#allocation5], 4
          %s132 = int_to_ptr.vmem [resolvable:$true] %s131
          %137 = dma.hbm_to_vmem [thread:$0]  %s1, 128, %s132, [#allocation6], 64, 64, 4
        $region16: #{downsample_forward.1} parent=11 // pred_fallthru
          _
        // Predicated region
        $region17: #{downsample_forward.1} parent=11 // pred_check
          %p138 = pneg %p84
        $region18: #{downsample_forward.1} parent=11 // pred_check_branch
          %140 = sbr.rel (%p138) target = $region20
        $region19: #{downsample_forward.1} parent=11 // pred_region
          %s142 = ssub.s32 64, 64
          %143 = vsyncadd [#allocation6], %s142
          %s145 = sshll.u32 [#allocation7], 4
          %s146 = int_to_ptr.vmem [resolvable:$true] %s145
          %148 = dma.hbm_to_vmem [thread:$0]  %s2, 64, %s146, [#allocation6]
        $region20: #{downsample_forward.1} parent=11 // pred_fallthru
          _
      $region12: #{downsample_forward.1} parent=5 // pred_fallthru
        _
      %p149 = scmp.lt.s32.totalorder %s16, 4
      // Predicated region
      $region21: #{downsample_forward.1} parent=5 // pred_check
        %p150 = pneg %p149
      $region22: #{downsample_forward.1} parent=5 // pred_check_branch
        %152 = sbr.rel (%p150) target = $region24
      $region23: #{downsample_forward.1} parent=5 // pred_region
        // Predicated region
        $region25: #{downsample_forward.1} parent=23 // pred_check
          %p153 = pneg %p36
        $region26: #{downsample_forward.1} parent=23 // pred_check_branch
          %155 = sbr.rel (%p153) target = $region28
        $region27: #{downsample_forward.1} parent=23 // pred_region
          %s156 = sand.u32 %s26, 1
          %s157 = scalar_lea.sflag [#allocation3], %s156
          %s158 = sand.u32 %s26, 1
          %s159 = smul.addr %s158, 32
          %s160 = scalar_lea.vmem [#allocation2], %s159
          %s161 = smul.u32 2, %s16
          %s163 = ssub.s32 512, 512
          %164 = vsyncadd %s157, %s163
          %s165 = smul.addr %s161, 2
          %s166 = smul.addr %s165, 128
          %s167 = scalar_lea.hbm %s0, %s166
          %s168 = sshll.u32 %s160, 4
          %s169 = int_to_ptr.vmem [resolvable:$true] %s168
          %174 = dma.hbm_to_vmem [thread:$0]  %s167, 512, %s169, %s157, 128, 128, 8
        $region28: #{downsample_forward.1} parent=23 // pred_fallthru
          _
      $region24: #{downsample_forward.1} parent=5 // pred_fallthru
        _
      %p175 = scmp.le.s32.totalorder 1, %s16
      %p176 = scmp.lt.s32.totalorder %s16, 5
      %p177 = pnand %p175, %p176
      %p178 = pneg %p177
      // Predicated region
      $region29: #{downsample_forward.1} parent=5 // pred_check
        _
      $region30: #{downsample_forward.1} parent=5 // pred_check_branch
        %180 = sbr.rel (%p177) target = $region32
      $region31: #{downsample_forward.1} parent=5 // pred_region
        %s181 = ssub.s32 %s16, 1
        %s182 = sand.u32 %s29, 1
        %s183 = scalar_lea.sflag [#allocation3], %s182
        %s184 = sand.u32 %s29, 1
        %s185 = smul.addr %s184, 32
        %s186 = scalar_lea.vmem [#allocation2], %s185
        // Predicated region
        $region33: #{downsample_forward.1} parent=31 // pred_check
          %p187 = pneg %p42
        $region34: #{downsample_forward.1} parent=31 // pred_check_branch
          %189 = sbr.rel (%p187) target = $region36
        $region35: #{downsample_forward.1} parent=31 // pred_region
          %190 = dma.done %s183, 512
        $region36: #{downsample_forward.1} parent=31 // pred_fallthru
          _
        // Predicated region
        $region37: #{downsample_forward.1} parent=31 // pred_check
          %p191 = pneg %p63
        $region38: #{downsample_forward.1} parent=31 // pred_check_branch
          %193 = sbr.rel (%p191) target = $region40
        $region39: #{downsample_forward.1} parent=31 // pred_region
          %194 = dma.done [#allocation6], 128
        $region40: #{downsample_forward.1} parent=31 // pred_fallthru
          _
        // Predicated region
        $region41: #{downsample_forward.1} parent=31 // pred_check
          %p195 = pneg %p84
        $region42: #{downsample_forward.1} parent=31 // pred_check_branch
          %197 = sbr.rel (%p195) target = $region44
        $region43: #{downsample_forward.1} parent=31 // pred_region
          %198 = dma.done [#allocation6], 64
        $region44: #{downsample_forward.1} parent=31 // pred_fallthru
          _
        %s199 = sand.u32 %s29, 1
        %s200 = scalar_lea.sflag [#allocation3], %s199
        %s201 = sand.u32 %s29, 1
        %s202 = smul.addr %s201, 32
        %s203 = scalar_lea.vmem [#allocation2], %s202
        %p204 = pneg %p42
        %p205 = pneg %p39
        %p206 = pneg %p63
        %p207 = pneg %p60
        %p208 = pneg %p84
        %p209 = pneg %p81
        %p210 = pneg %p110
        %p211 = pneg %p107
        %s212 = sand.u32 %s97, 1
        %s213 = scalar_lea.sflag [#allocation4], %s212
        %s214 = sand.u32 %s97, 1
        %s215 = smul.addr %s214, 16
        %s216 = scalar_lea.vmem [#allocation8], %s215
        %s217 = smul.u32 2, %s21
        %s218 = smul.u32 2, %s21
        %v220 = vld [vmem:[%s186] sm:$0xff]
        %v221 = vld [vmem:[%s186 + $0x8] sm:$0xff]
        %v222 = vld [vmem:[%s186 + $0x10] sm:$0xff]
        %v223 = vld [vmem:[%s186 + $0x18] sm:$0xff]
        %v224 = vld [vmem:[#allocation5] sm:$0xf]
        %v225 = vld [vmem:[#allocation5 + $0x4] sm:$0xf]
        %v226 = vld [vmem:[#allocation7] sm:$0xf]
        %v227 = vpack.c.bf16 %v221, %v220
        %v228 = vpack.c.bf16 %v223, %v222
        %v229 = vunpack.c.l.bf16 %v227
        %v230 = vunpack.c.h.bf16 %v227
        %v231 = vunpack.c.l.bf16 %v228
        %v232 = vunpack.c.h.bf16 %v228
        %v233 = vsub.f32 %v220, %v229
        %v234 = vsub.f32 %v221, %v230
        %v235 = vsub.f32 %v222, %v231
        %v236 = vsub.f32 %v223, %v232
        %v237 = vpack.c.bf16 %v234, %v233
        %v238 = vpack.c.bf16 %v236, %v235
        %v239 = vunpack.c.l.bf16 %v237
        %v240 = vunpack.c.h.bf16 %v237
        %v241 = vunpack.c.l.bf16 %v238
        %v242 = vunpack.c.h.bf16 %v238
        %v243 = vsub.f32 %v233, %v239
        %v244 = vsub.f32 %v234, %v240
        %v245 = vsub.f32 %v235, %v241
        %v246 = vsub.f32 %v236, %v242
        %v247 = vpack.c.bf16 %v244, %v243
        %v248 = vpack.c.bf16 %v246, %v245
        %v251 = vunpack.c.l.b16 %v224
        %v252 = vunpack.c.l.b16 %v225
        %v253 = vpack.c.b16 %v252, %v251
        %vm255 = vcmask 130048
        %v257 = vsel %vm255, %v237, 0
        %259 = vmatprep.subr.bf16.mxu0 0
        %260 = vmatpush1.bf16.msra.mxu0 0
        %261 = vmatprep.subr.bf16.mxu0 0
        %262 = vmatpush1.bf16.msra.mxu0 0
        %263 = vmatprep.subr.bf16.mxu0 0
        %264 = vmatpush1.bf16.msra.mxu0 0
        %265 = vmatprep.subr.bf16.mxu0 0
        %266 = vmatpush1.bf16.msra.mxu0 0
        %267 = vmatprep.subr.bf16.mxu0 0
        %268 = vmatpush1.bf16.msra.mxu0 0
        %269 = vmatprep.subr.bf16.mxu0 0
        %270 = vmatpush1.bf16.msra.mxu0 0
        %271 = vmatprep.subr.bf16.mxu0 0
        %272 = vmatpush1.bf16.msra.mxu0 0
        %273 = vmatprep.subr.bf16.mxu0 0
        %274 = vmatpush1.bf16.msra.mxu0 %v253
        %275 = vmatprep.subr.bf16.mxu0 0
        %276 = vmatpush2.bf16.msra.mxu0 0
        %277 = vmatprep.subr.bf16.mxu0 0
        %278 = vmatpush2.bf16.msra.mxu0 0
        %279 = vmatprep.subr.bf16.mxu0 0
        %280 = vmatpush2.bf16.msra.mxu0 0
        %281 = vmatprep.subr.bf16.mxu0 0
        %282 = vmatpush2.bf16.msra.mxu0 0
        %283 = vmatprep.subr.bf16.mxu0 0
        %284 = vmatpush2.bf16.msra.mxu0 0
        %285 = vmatprep.subr.bf16.mxu0 0
        %286 = vmatpush2.bf16.msra.mxu0 0
        %287 = vmatprep.subr.bf16.mxu0 0
        %288 = vmatpush2.bf16.msra.mxu0 0
        %289 = vmatprep.subr.bf16.mxu0 0
        %290 = vmatpush2.bf16.msra.mxu0 0
        %291 = vmatprep.mubr.bf16.mxu0 0
        %292 = vmatmul.mubr.bf16.gmra.mxu0 %v257
        %v293 = vpop.f32.mrf.mxu0
        %v294 = vadd.f32 0.0, %v293
        %v295 = vpop.f32.mrf.mxu0
        %v296 = vpop.f32.mrf.mxu0
        %v297 = vadd.f32 0.0, %v296
        %v298 = vpop.f32.mrf.mxu0
        %299 = vdwg.mxu0
        %v301 = vsel %vm255, %v238, 0
        %303 = vmatprep.subr.bf16.mxu0 0
        %304 = vmatpush1.bf16.msra.mxu0 0
        %305 = vmatprep.subr.bf16.mxu0 0
        %306 = vmatpush1.bf16.msra.mxu0 0
        %307 = vmatprep.subr.bf16.mxu0 0
        %308 = vmatpush1.bf16.msra.mxu0 0
        %309 = vmatprep.subr.bf16.mxu0 0
        %310 = vmatpush1.bf16.msra.mxu0 0
        %311 = vmatprep.subr.bf16.mxu0 0
        %312 = vmatpush1.bf16.msra.mxu0 0
        %313 = vmatprep.subr.bf16.mxu0 0
        %314 = vmatpush1.bf16.msra.mxu0 0
        %315 = vmatprep.subr.bf16.mxu0 0
        %316 = vmatpush1.bf16.msra.mxu0 0
        %317 = vmatprep.subr.bf16.mxu0 0
        %318 = vmatpush1.bf16.msra.mxu0 %v253
        %319 = vmatprep.subr.bf16.mxu0 0
        %320 = vmatpush2.bf16.msra.mxu0 0
        %321 = vmatprep.subr.bf16.mxu0 0
        %322 = vmatpush2.bf16.msra.mxu0 0
        %323 = vmatprep.subr.bf16.mxu0 0
        %324 = vmatpush2.bf16.msra.mxu0 0
        %325 = vmatprep.subr.bf16.mxu0 0
        %326 = vmatpush2.bf16.msra.mxu0 0
        %327 = vmatprep.subr.bf16.mxu0 0
        %328 = vmatpush2.bf16.msra.mxu0 0
        %329 = vmatprep.subr.bf16.mxu0 0
        %330 = vmatpush2.bf16.msra.mxu0 0
        %331 = vmatprep.subr.bf16.mxu0 0
        %332 = vmatpush2.bf16.msra.mxu0 0
        %333 = vmatprep.subr.bf16.mxu0 0
        %334 = vmatpush2.bf16.msra.mxu0 0
        %335 = vmatprep.mubr.bf16.mxu0 0
        %336 = vmatmul.mubr.bf16.gmra.mxu0 %v301
        %v337 = vpop.f32.mrf.mxu0
        %v338 = vadd.f32 0.0, %v337
        %v339 = vpop.f32.mrf.mxu0
        %v340 = vpop.f32.mrf.mxu0
        %v341 = vadd.f32 0.0, %v340
        %v342 = vpop.f32.mrf.mxu0
        %343 = vdwg.mxu0
        %v345 = vsel %vm255, %v227, 0
        %347 = vmatprep.subr.bf16.mxu0 0
        %348 = vmatpush1.bf16.msra.mxu0 0
        %349 = vmatprep.subr.bf16.mxu0 0
        %350 = vmatpush1.bf16.msra.mxu0 0
        %351 = vmatprep.subr.bf16.mxu0 0
        %352 = vmatpush1.bf16.msra.mxu0 0
        %353 = vmatprep.subr.bf16.mxu0 0
        %354 = vmatpush1.bf16.msra.mxu0 0
        %355 = vmatprep.subr.bf16.mxu0 0
        %356 = vmatpush1.bf16.msra.mxu0 0
        %357 = vmatprep.subr.bf16.mxu0 0
        %358 = vmatpush1.bf16.msra.mxu0 0
        %359 = vmatprep.subr.bf16.mxu0 0
        %360 = vmatpush1.bf16.msra.mxu0 0
        %361 = vmatprep.subr.bf16.mxu0 0
        %362 = vmatpush1.bf16.msra.mxu0 %v253
        %363 = vmatprep.subr.bf16.mxu0 0
        %364 = vmatpush2.bf16.msra.mxu0 0
        %365 = vmatprep.subr.bf16.mxu0 0
        %366 = vmatpush2.bf16.msra.mxu0 0
        %367 = vmatprep.subr.bf16.mxu0 0
        %368 = vmatpush2.bf16.msra.mxu0 0
        %369 = vmatprep.subr.bf16.mxu0 0
        %370 = vmatpush2.bf16.msra.mxu0 0
        %371 = vmatprep.subr.bf16.mxu0 0
        %372 = vmatpush2.bf16.msra.mxu0 0
        %373 = vmatprep.subr.bf16.mxu0 0
        %374 = vmatpush2.bf16.msra.mxu0 0
        %375 = vmatprep.subr.bf16.mxu0 0
        %376 = vmatpush2.bf16.msra.mxu0 0
        %377 = vmatprep.subr.bf16.mxu0 0
        %378 = vmatpush2.bf16.msra.mxu0 0
        %379 = vmatprep.mubr.bf16.mxu0 0
        %380 = vmatmul.mubr.bf16.gmra.mxu0 %v345
        %v381 = vpop.f32.mrf.mxu0
        %v382 = vadd.f32 %v294, %v381
        %v383 = vpop.f32.mrf.mxu0
        %v384 = vpop.f32.mrf.mxu0
        %v385 = vadd.f32 %v297, %v384
        %v386 = vpop.f32.mrf.mxu0
        %387 = vdwg.mxu0
        %v389 = vsel %vm255, %v228, 0
        %391 = vmatprep.subr.bf16.mxu0 0
        %392 = vmatpush1.bf16.msra.mxu0 0
        %393 = vmatprep.subr.bf16.mxu0 0
        %394 = vmatpush1.bf16.msra.mxu0 0
        %395 = vmatprep.subr.bf16.mxu0 0
        %396 = vmatpush1.bf16.msra.mxu0 0
        %397 = vmatprep.subr.bf16.mxu0 0
        %398 = vmatpush1.bf16.msra.mxu0 0
        %399 = vmatprep.subr.bf16.mxu0 0
        %400 = vmatpush1.bf16.msra.mxu0 0
        %401 = vmatprep.subr.bf16.mxu0 0
        %402 = vmatpush1.bf16.msra.mxu0 0
        %403 = vmatprep.subr.bf16.mxu0 0
        %404 = vmatpush1.bf16.msra.mxu0 0
        %405 = vmatprep.subr.bf16.mxu0 0
        %406 = vmatpush1.bf16.msra.mxu0 %v253
        %407 = vmatprep.subr.bf16.mxu0 0
        %408 = vmatpush2.bf16.msra.mxu0 0
        %409 = vmatprep.subr.bf16.mxu0 0
        %410 = vmatpush2.bf16.msra.mxu0 0
        %411 = vmatprep.subr.bf16.mxu0 0
        %412 = vmatpush2.bf16.msra.mxu0 0
        %413 = vmatprep.subr.bf16.mxu0 0
        %414 = vmatpush2.bf16.msra.mxu0 0
        %415 = vmatprep.subr.bf16.mxu0 0
        %416 = vmatpush2.bf16.msra.mxu0 0
        %417 = vmatprep.subr.bf16.mxu0 0
        %418 = vmatpush2.bf16.msra.mxu0 0
        %419 = vmatprep.subr.bf16.mxu0 0
        %420 = vmatpush2.bf16.msra.mxu0 0
        %421 = vmatprep.subr.bf16.mxu0 0
        %422 = vmatpush2.bf16.msra.mxu0 0
        %423 = vmatprep.mubr.bf16.mxu0 0
        %424 = vmatmul.mubr.bf16.gmra.mxu0 %v389
        %v425 = vpop.f32.mrf.mxu0
        %v426 = vadd.f32 %v338, %v425
        %v427 = vpop.f32.mrf.mxu0
        %v428 = vpop.f32.mrf.mxu0
        %v429 = vadd.f32 %v341, %v428
        %v430 = vpop.f32.mrf.mxu0
        %431 = vdwg.mxu0
        %v433 = vsel %vm255, %v247, 0
        %435 = vmatprep.subr.bf16.mxu0 0
        %436 = vmatpush1.bf16.msra.mxu0 0
        %437 = vmatprep.subr.bf16.mxu0 0
        %438 = vmatpush1.bf16.msra.mxu0 0
        %439 = vmatprep.subr.bf16.mxu0 0
        %440 = vmatpush1.bf16.msra.mxu0 0
        %441 = vmatprep.subr.bf16.mxu0 0
        %442 = vmatpush1.bf16.msra.mxu0 0
        %443 = vmatprep.subr.bf16.mxu0 0
        %444 = vmatpush1.bf16.msra.mxu0 0
        %445 = vmatprep.subr.bf16.mxu0 0
        %446 = vmatpush1.bf16.msra.mxu0 0
        %447 = vmatprep.subr.bf16.mxu0 0
        %448 = vmatpush1.bf16.msra.mxu0 0
        %449 = vmatprep.subr.bf16.mxu0 0
        %450 = vmatpush1.bf16.msra.mxu0 %v253
        %451 = vmatprep.subr.bf16.mxu0 0
        %452 = vmatpush2.bf16.msra.mxu0 0
        %453 = vmatprep.subr.bf16.mxu0 0
        %454 = vmatpush2.bf16.msra.mxu0 0
        %455 = vmatprep.subr.bf16.mxu0 0
        %456 = vmatpush2.bf16.msra.mxu0 0
        %457 = vmatprep.subr.bf16.mxu0 0
        %458 = vmatpush2.bf16.msra.mxu0 0
        %459 = vmatprep.subr.bf16.mxu0 0
        %460 = vmatpush2.bf16.msra.mxu0 0
        %461 = vmatprep.subr.bf16.mxu0 0
        %462 = vmatpush2.bf16.msra.mxu0 0
        %463 = vmatprep.subr.bf16.mxu0 0
        %464 = vmatpush2.bf16.msra.mxu0 0
        %465 = vmatprep.subr.bf16.mxu0 0
        %466 = vmatpush2.bf16.msra.mxu0 0
        %467 = vmatprep.mubr.bf16.mxu0 0
        %468 = vmatmul.mubr.bf16.gmra.mxu0 %v433
        %v469 = vpop.f32.mrf.mxu0
        %v470 = vadd.f32 0.0, %v469
        %v471 = vpop.f32.mrf.mxu0
        %v472 = vpop.f32.mrf.mxu0
        %v473 = vadd.f32 0.0, %v472
        %v474 = vpop.f32.mrf.mxu0
        %475 = vdwg.mxu0
        %v477 = vsel %vm255, %v248, 0
        %479 = vmatprep.subr.bf16.mxu0 0
        %480 = vmatpush1.bf16.msra.mxu0 0
        %481 = vmatprep.subr.bf16.mxu0 0
        %482 = vmatpush1.bf16.msra.mxu0 0
        %483 = vmatprep.subr.bf16.mxu0 0
        %484 = vmatpush1.bf16.msra.mxu0 0
        %485 = vmatprep.subr.bf16.mxu0 0
        %486 = vmatpush1.bf16.msra.mxu0 0
        %487 = vmatprep.subr.bf16.mxu0 0
        %488 = vmatpush1.bf16.msra.mxu0 0
        %489 = vmatprep.subr.bf16.mxu0 0
        %490 = vmatpush1.bf16.msra.mxu0 0
        %491 = vmatprep.subr.bf16.mxu0 0
        %492 = vmatpush1.bf16.msra.mxu0 0
        %493 = vmatprep.subr.bf16.mxu0 0
        %494 = vmatpush1.bf16.msra.mxu0 %v253
        %495 = vmatprep.subr.bf16.mxu0 0
        %496 = vmatpush2.bf16.msra.mxu0 0
        %497 = vmatprep.subr.bf16.mxu0 0
        %498 = vmatpush2.bf16.msra.mxu0 0
        %499 = vmatprep.subr.bf16.mxu0 0
        %500 = vmatpush2.bf16.msra.mxu0 0
        %501 = vmatprep.subr.bf16.mxu0 0
        %502 = vmatpush2.bf16.msra.mxu0 0
        %503 = vmatprep.subr.bf16.mxu0 0
        %504 = vmatpush2.bf16.msra.mxu0 0
        %505 = vmatprep.subr.bf16.mxu0 0
        %506 = vmatpush2.bf16.msra.mxu0 0
        %507 = vmatprep.subr.bf16.mxu0 0
        %508 = vmatpush2.bf16.msra.mxu0 0
        %509 = vmatprep.subr.bf16.mxu0 0
        %510 = vmatpush2.bf16.msra.mxu0 0
        %511 = vmatprep.mubr.bf16.mxu0 0
        %512 = vmatmul.mubr.bf16.gmra.mxu0 %v477
        %v513 = vpop.f32.mrf.mxu0
        %v514 = vadd.f32 0.0, %v513
        %v515 = vpop.f32.mrf.mxu0
        %v516 = vpop.f32.mrf.mxu0
        %v517 = vadd.f32 0.0, %v516
        %v518 = vpop.f32.mrf.mxu0
        %519 = vdwg.mxu0
        %v520 = vadd.f32 %v382, %v470
        %v521 = vadd.f32 %v385, %v473
        %v522 = vadd.f32 %v426, %v514
        %v523 = vadd.f32 %v429, %v517
        %v524 = vpack.c.bf16 %v521, %v520
        %v525 = vpack.c.bf16 %v523, %v522
        %v526 = vunpack.c.l.bf16 %v524
        %v527 = vunpack.c.h.bf16 %v524
        %v528 = vunpack.c.l.bf16 %v525
        %v529 = vunpack.c.h.bf16 %v525
        %v530 = vsub.f32 %v520, %v526
        %v531 = vsub.f32 %v521, %v527
        %v532 = vsub.f32 %v522, %v528
        %v533 = vsub.f32 %v523, %v529
        %v534 = vpack.c.bf16 %v531, %v530
        %v535 = vpack.c.bf16 %v533, %v532
        %v536 = vunpack.c.l.bf16 %v534
        %v537 = vunpack.c.h.bf16 %v534
        %v538 = vunpack.c.l.bf16 %v535
        %v539 = vunpack.c.h.bf16 %v535
        %v540 = vsub.f32 %v530, %v536
        %v541 = vsub.f32 %v531, %v537
        %v542 = vsub.f32 %v532, %v538
        %v543 = vsub.f32 %v533, %v539
        %v544 = vpack.c.bf16 %v541, %v540
        %v545 = vpack.c.bf16 %v543, %v542
        %v547 = vsel %vm255, %v226, 0
        %549 = vmatprep.subr.bf16.mxu0 0
        %550 = vmatpush1.bf16.msra.mxu0 0
        %551 = vmatprep.subr.bf16.mxu0 0
        %552 = vmatpush1.bf16.msra.mxu0 0
        %553 = vmatprep.subr.bf16.mxu0 0
        %554 = vmatpush1.bf16.msra.mxu0 0
        %555 = vmatprep.subr.bf16.mxu0 0
        %556 = vmatpush1.bf16.msra.mxu0 0
        %557 = vmatprep.subr.bf16.mxu0 0
        %558 = vmatpush1.bf16.msra.mxu0 0
        %559 = vmatprep.subr.bf16.mxu0 0
        %560 = vmatpush1.bf16.msra.mxu0 0
        %561 = vmatprep.subr.bf16.mxu0 0
        %562 = vmatpush1.bf16.msra.mxu0 0
        %563 = vmatprep.subr.bf16.mxu0 0
        %564 = vmatpush1.bf16.msra.mxu0 %v534
        %565 = vmatprep.subr.bf16.mxu0 0
        %566 = vmatpush2.bf16.msra.mxu0 0
        %567 = vmatprep.subr.bf16.mxu0 0
        %568 = vmatpush2.bf16.msra.mxu0 0
        %569 = vmatprep.subr.bf16.mxu0 0
        %570 = vmatpush2.bf16.msra.mxu0 0
        %571 = vmatprep.subr.bf16.mxu0 0
        %572 = vmatpush2.bf16.msra.mxu0 0
        %573 = vmatprep.subr.bf16.mxu0 0
        %574 = vmatpush2.bf16.msra.mxu0 0
        %575 = vmatprep.subr.bf16.mxu0 0
        %576 = vmatpush2.bf16.msra.mxu0 0
        %577 = vmatprep.subr.bf16.mxu0 0
        %578 = vmatpush2.bf16.msra.mxu0 0
        %579 = vmatprep.subr.bf16.mxu0 0
        %580 = vmatpush2.bf16.msra.mxu0 0
        %581 = vmatprep.mubr.bf16.mxu0 0
        %582 = vmatmul.mubr.bf16.gmra.mxu0 %v547
        %v583 = vpop.f32.mrf.mxu0
        %v584 = vadd.f32 0.0, %v583
        %v585 = vpop.f32.mrf.mxu0
        %v586 = vpop.f32.mrf.mxu0
        %v587 = vpop.f32.mrf.mxu0
        %588 = vdwg.mxu0
        %589 = vmatprep.subr.bf16.mxu0 0
        %590 = vmatpush1.bf16.msra.mxu0 0
        %591 = vmatprep.subr.bf16.mxu0 0
        %592 = vmatpush1.bf16.msra.mxu0 0
        %593 = vmatprep.subr.bf16.mxu0 0
        %594 = vmatpush1.bf16.msra.mxu0 0
        %595 = vmatprep.subr.bf16.mxu0 0
        %596 = vmatpush1.bf16.msra.mxu0 0
        %597 = vmatprep.subr.bf16.mxu0 0
        %598 = vmatpush1.bf16.msra.mxu0 0
        %599 = vmatprep.subr.bf16.mxu0 0
        %600 = vmatpush1.bf16.msra.mxu0 0
        %601 = vmatprep.subr.bf16.mxu0 0
        %602 = vmatpush1.bf16.msra.mxu0 0
        %603 = vmatprep.subr.bf16.mxu0 0
        %604 = vmatpush1.bf16.msra.mxu0 %v535
        %605 = vmatprep.subr.bf16.mxu0 0
        %606 = vmatpush2.bf16.msra.mxu0 0
        %607 = vmatprep.subr.bf16.mxu0 0
        %608 = vmatpush2.bf16.msra.mxu0 0
        %609 = vmatprep.subr.bf16.mxu0 0
        %610 = vmatpush2.bf16.msra.mxu0 0
        %611 = vmatprep.subr.bf16.mxu0 0
        %612 = vmatpush2.bf16.msra.mxu0 0
        %613 = vmatprep.subr.bf16.mxu0 0
        %614 = vmatpush2.bf16.msra.mxu0 0
        %615 = vmatprep.subr.bf16.mxu0 0
        %616 = vmatpush2.bf16.msra.mxu0 0
        %617 = vmatprep.subr.bf16.mxu0 0
        %618 = vmatpush2.bf16.msra.mxu0 0
        %619 = vmatprep.subr.bf16.mxu0 0
        %620 = vmatpush2.bf16.msra.mxu0 0
        %621 = vmatprep.mubr.bf16.mxu0 0
        %622 = vmatmul.mubr.bf16.gmra.mxu0 %v547
        %v623 = vpop.f32.mrf.mxu0
        %v624 = vadd.f32 0.0, %v623
        %v625 = vpop.f32.mrf.mxu0
        %v626 = vpop.f32.mrf.mxu0
        %v627 = vpop.f32.mrf.mxu0
        %628 = vdwg.mxu0
        %629 = vmatprep.subr.bf16.mxu0 0
        %630 = vmatpush1.bf16.msra.mxu0 0
        %631 = vmatprep.subr.bf16.mxu0 0
        %632 = vmatpush1.bf16.msra.mxu0 0
        %633 = vmatprep.subr.bf16.mxu0 0
        %634 = vmatpush1.bf16.msra.mxu0 0
        %635 = vmatprep.subr.bf16.mxu0 0
        %636 = vmatpush1.bf16.msra.mxu0 0
        %637 = vmatprep.subr.bf16.mxu0 0
        %638 = vmatpush1.bf16.msra.mxu0 0
        %639 = vmatprep.subr.bf16.mxu0 0
        %640 = vmatpush1.bf16.msra.mxu0 0
        %641 = vmatprep.subr.bf16.mxu0 0
        %642 = vmatpush1.bf16.msra.mxu0 0
        %643 = vmatprep.subr.bf16.mxu0 0
        %644 = vmatpush1.bf16.msra.mxu0 %v524
        %645 = vmatprep.subr.bf16.mxu0 0
        %646 = vmatpush2.bf16.msra.mxu0 0
        %647 = vmatprep.subr.bf16.mxu0 0
        %648 = vmatpush2.bf16.msra.mxu0 0
        %649 = vmatprep.subr.bf16.mxu0 0
        %650 = vmatpush2.bf16.msra.mxu0 0
        %651 = vmatprep.subr.bf16.mxu0 0
        %652 = vmatpush2.bf16.msra.mxu0 0
        %653 = vmatprep.subr.bf16.mxu0 0
        %654 = vmatpush2.bf16.msra.mxu0 0
        %655 = vmatprep.subr.bf16.mxu0 0
        %656 = vmatpush2.bf16.msra.mxu0 0
        %657 = vmatprep.subr.bf16.mxu0 0
        %658 = vmatpush2.bf16.msra.mxu0 0
        %659 = vmatprep.subr.bf16.mxu0 0
        %660 = vmatpush2.bf16.msra.mxu0 0
        %661 = vmatprep.mubr.bf16.mxu0 0
        %662 = vmatmul.mubr.bf16.gmra.mxu0 %v547
        %v663 = vpop.f32.mrf.mxu0
        %v664 = vadd.f32 %v584, %v663
        %v665 = vpop.f32.mrf.mxu0
        %v666 = vpop.f32.mrf.mxu0
        %v667 = vpop.f32.mrf.mxu0
        %668 = vdwg.mxu0
        %669 = vmatprep.subr.bf16.mxu0 0
        %670 = vmatpush1.bf16.msra.mxu0 0
        %671 = vmatprep.subr.bf16.mxu0 0
        %672 = vmatpush1.bf16.msra.mxu0 0
        %673 = vmatprep.subr.bf16.mxu0 0
        %674 = vmatpush1.bf16.msra.mxu0 0
        %675 = vmatprep.subr.bf16.mxu0 0
        %676 = vmatpush1.bf16.msra.mxu0 0
        %677 = vmatprep.subr.bf16.mxu0 0
        %678 = vmatpush1.bf16.msra.mxu0 0
        %679 = vmatprep.subr.bf16.mxu0 0
        %680 = vmatpush1.bf16.msra.mxu0 0
        %681 = vmatprep.subr.bf16.mxu0 0
        %682 = vmatpush1.bf16.msra.mxu0 0
        %683 = vmatprep.subr.bf16.mxu0 0
        %684 = vmatpush1.bf16.msra.mxu0 %v525
        %685 = vmatprep.subr.bf16.mxu0 0
        %686 = vmatpush2.bf16.msra.mxu0 0
        %687 = vmatprep.subr.bf16.mxu0 0
        %688 = vmatpush2.bf16.msra.mxu0 0
        %689 = vmatprep.subr.bf16.mxu0 0
        %690 = vmatpush2.bf16.msra.mxu0 0
        %691 = vmatprep.subr.bf16.mxu0 0
        %692 = vmatpush2.bf16.msra.mxu0 0
        %693 = vmatprep.subr.bf16.mxu0 0
        %694 = vmatpush2.bf16.msra.mxu0 0
        %695 = vmatprep.subr.bf16.mxu0 0
        %696 = vmatpush2.bf16.msra.mxu0 0
        %697 = vmatprep.subr.bf16.mxu0 0
        %698 = vmatpush2.bf16.msra.mxu0 0
        %699 = vmatprep.subr.bf16.mxu0 0
        %700 = vmatpush2.bf16.msra.mxu0 0
        %701 = vmatprep.mubr.bf16.mxu0 0
        %702 = vmatmul.mubr.bf16.gmra.mxu0 %v547
        %v703 = vpop.f32.mrf.mxu0
        %v704 = vadd.f32 %v624, %v703
        %v705 = vpop.f32.mrf.mxu0
        %v706 = vpop.f32.mrf.mxu0
        %v707 = vpop.f32.mrf.mxu0
        %708 = vdwg.mxu0
        %709 = vmatprep.subr.bf16.mxu0 0
        %710 = vmatpush1.bf16.msra.mxu0 0
        %711 = vmatprep.subr.bf16.mxu0 0
        %712 = vmatpush1.bf16.msra.mxu0 0
        %713 = vmatprep.subr.bf16.mxu0 0
        %714 = vmatpush1.bf16.msra.mxu0 0
        %715 = vmatprep.subr.bf16.mxu0 0
        %716 = vmatpush1.bf16.msra.mxu0 0
        %717 = vmatprep.subr.bf16.mxu0 0
        %718 = vmatpush1.bf16.msra.mxu0 0
        %719 = vmatprep.subr.bf16.mxu0 0
        %720 = vmatpush1.bf16.msra.mxu0 0
        %721 = vmatprep.subr.bf16.mxu0 0
        %722 = vmatpush1.bf16.msra.mxu0 0
        %723 = vmatprep.subr.bf16.mxu0 0
        %724 = vmatpush1.bf16.msra.mxu0 %v544
        %725 = vmatprep.subr.bf16.mxu0 0
        %726 = vmatpush2.bf16.msra.mxu0 0
        %727 = vmatprep.subr.bf16.mxu0 0
        %728 = vmatpush2.bf16.msra.mxu0 0
        %729 = vmatprep.subr.bf16.mxu0 0
        %730 = vmatpush2.bf16.msra.mxu0 0
        %731 = vmatprep.subr.bf16.mxu0 0
        %732 = vmatpush2.bf16.msra.mxu0 0
        %733 = vmatprep.subr.bf16.mxu0 0
        %734 = vmatpush2.bf16.msra.mxu0 0
        %735 = vmatprep.subr.bf16.mxu0 0
        %736 = vmatpush2.bf16.msra.mxu0 0
        %737 = vmatprep.subr.bf16.mxu0 0
        %738 = vmatpush2.bf16.msra.mxu0 0
        %739 = vmatprep.subr.bf16.mxu0 0
        %740 = vmatpush2.bf16.msra.mxu0 0
        %741 = vmatprep.mubr.bf16.mxu0 0
        %742 = vmatmul.mubr.bf16.gmra.mxu0 %v547
        %v743 = vpop.f32.mrf.mxu0
        %v744 = vadd.f32 0.0, %v743
        %v745 = vpop.f32.mrf.mxu0
        %v746 = vpop.f32.mrf.mxu0
        %v747 = vpop.f32.mrf.mxu0
        %748 = vdwg.mxu0
        %749 = vmatprep.subr.bf16.mxu0 0
        %750 = vmatpush1.bf16.msra.mxu0 0
        %751 = vmatprep.subr.bf16.mxu0 0
        %752 = vmatpush1.bf16.msra.mxu0 0
        %753 = vmatprep.subr.bf16.mxu0 0
        %754 = vmatpush1.bf16.msra.mxu0 0
        %755 = vmatprep.subr.bf16.mxu0 0
        %756 = vmatpush1.bf16.msra.mxu0 0
        %757 = vmatprep.subr.bf16.mxu0 0
        %758 = vmatpush1.bf16.msra.mxu0 0
        %759 = vmatprep.subr.bf16.mxu0 0
        %760 = vmatpush1.bf16.msra.mxu0 0
        %761 = vmatprep.subr.bf16.mxu0 0
        %762 = vmatpush1.bf16.msra.mxu0 0
        %763 = vmatprep.subr.bf16.mxu0 0
        %764 = vmatpush1.bf16.msra.mxu0 %v545
        %765 = vmatprep.subr.bf16.mxu0 0
        %766 = vmatpush2.bf16.msra.mxu0 0
        %767 = vmatprep.subr.bf16.mxu0 0
        %768 = vmatpush2.bf16.msra.mxu0 0
        %769 = vmatprep.subr.bf16.mxu0 0
        %770 = vmatpush2.bf16.msra.mxu0 0
        %771 = vmatprep.subr.bf16.mxu0 0
        %772 = vmatpush2.bf16.msra.mxu0 0
        %773 = vmatprep.subr.bf16.mxu0 0
        %774 = vmatpush2.bf16.msra.mxu0 0
        %775 = vmatprep.subr.bf16.mxu0 0
        %776 = vmatpush2.bf16.msra.mxu0 0
        %777 = vmatprep.subr.bf16.mxu0 0
        %778 = vmatpush2.bf16.msra.mxu0 0
        %779 = vmatprep.subr.bf16.mxu0 0
        %780 = vmatpush2.bf16.msra.mxu0 0
        %781 = vmatprep.mubr.bf16.mxu0 0
        %782 = vmatmul.mubr.bf16.gmra.mxu0 %v547
        %v783 = vpop.f32.mrf.mxu0
        %v784 = vadd.f32 0.0, %v783
        %v785 = vpop.f32.mrf.mxu0
        %v786 = vpop.f32.mrf.mxu0
        %v787 = vpop.f32.mrf.mxu0
        %788 = vdwg.mxu0
        %v789 = vadd.f32 %v664, %v744
        %v790 = vadd.f32 %v704, %v784
        %vm791 = vcmask 64512
        %792 = vst.msk [vmem:[%s216] sm:$0xff] %vm791, %v789
        %793 = vst.msk [vmem:[%s216 + $0x8] sm:$0xff] %vm791, %v790
        %s794 = sand.u32 %s97, 1
        %s795 = scalar_lea.sflag [#allocation4], %s794
        %s796 = sand.u32 %s97, 1
        %s797 = smul.addr %s796, 16
        %s798 = scalar_lea.vmem [#allocation8], %s797
        // Predicated region
        $region45: #{downsample_forward.1} parent=31 // pred_check
          %p799 = pneg %p107
        $region46: #{downsample_forward.1} parent=31 // pred_check_branch
          %801 = sbr.rel (%p799) target = $region48
        $region47: #{downsample_forward.1} parent=31 // pred_region
          %s802 = smul.u32 2, %s21
          %s804 = ssub.s32 256, 256
          %805 = vsyncadd %s795, %s804
          %s806 = smul.addr %s802, 128
          %s807 = scalar_lea.hbm %s3, %s806
          %s808 = sshll.u32 %s798, 4
          %s809 = int_to_ptr.vmem [resolvable:$true] %s808
          %814 = dma.vmem_to_hbm [thread:$0]  %s809, 256, %s807, %s795, 128, 128, 8
        $region48: #{downsample_forward.1} parent=31 // pred_fallthru
          _
      $region32: #{downsample_forward.1} parent=5 // pred_fallthru
        _
      %p815 = scmp.le.s32.totalorder 2, %s16
      // Predicated region
      $region49: #{downsample_forward.1} parent=5 // pred_check
        %p816 = pneg %p815
      $region50: #{downsample_forward.1} parent=5 // pred_check_branch
        %818 = sbr.rel (%p816) target = $region52
      $region51: #{downsample_forward.1} parent=5 // pred_region
        %s819 = ssub.s32 %s16, 2
        // Predicated region
        $region53: #{downsample_forward.1} parent=51 // pred_check
          %p820 = pneg %p113
        $region54: #{downsample_forward.1} parent=51 // pred_check_branch
          %822 = sbr.rel (%p820) target = $region56
        $region55: #{downsample_forward.1} parent=51 // pred_region
          %s823 = sand.u32 %s98, 1
          %s824 = scalar_lea.sflag [#allocation4], %s823
          %s825 = sand.u32 %s98, 1
          %s826 = smul.addr %s825, 16
          %s827 = scalar_lea.vmem [#allocation8], %s826
          %828 = dma.done %s824, 256
        $region56: #{downsample_forward.1} parent=51 // pred_fallthru
          _
      $region52: #{downsample_forward.1} parent=5 // pred_fallthru
        _
    $region6: #{downsample_forward.1} parent=1 // loop_footer
      %s20 = sadd.s32 1, %s16
    $region7: #{downsample_forward.1} parent=1 // loop_footer_branch
      %15 = sbr.rel target = $region3
    $region8: #{downsample_forward.1} parent=1 // loop_exit
      _
    %829 = vsyncpa [#allocation3], 1
    %s830 = scalar_lea.sflag [#allocation3], 1
    %831 = vsyncpa %s830, 1
    %832 = vsyncpa [#allocation6], 1
    %833 = vsyncpa [#allocation4], 1
    %s834 = scalar_lea.sflag [#allocation4], 1
    %835 = vsyncpa %s834, 1

</llo_original>
